<compile_context>
chip_gen: v7x
topology: tpu7x:2x2x1
jax: 0.10.0
libtpu: 0.0.40
codegen_flags: <defaults>
</compile_context>

<pallas_src>
import functools

import jax
import jax.numpy as jnp
import numpy as np
from jax.experimental import pallas as pl
from jax.experimental.pallas import tpu as pltpu


def positional_embedding(length: int, dim: int) -> np.ndarray:
    """Standard sinusoidal positional embedding (diff_u.positional_embedding)."""
    pos = np.arange(length, dtype=np.float64)[:, None]                  # [L, 1]
    i = np.arange(dim // 2, dtype=np.float64)[None, :]                  # [1, dim/2]
    angle = pos / np.power(10000.0, 2.0 * i / dim)                      # [L, dim/2]
    pe = np.zeros((length, dim), dtype=np.float64)
    pe[:, 0::2] = np.sin(angle)
    pe[:, 1::2] = np.cos(angle)
    return pe.astype(np.float32)


def _timestep_embed_kernel(pos_n_ref, pos_t_ref, seq_ref, w_ref, out_ref,
                           *, B: int, N: int):
    """Single-invocation fused TimestepEmbedding forward.

    pos_n_ref : VMEM [N, P]        first N rows of pos_embedding_N (BlockSpec window)
    pos_t_ref : VMEM [B, P]        gathered embed_T rows (gather done in wrapper)
    seq_ref   : VMEM [B*N, I]
    w_ref     : VMEM [2P+I, O]     transposed Linear weight, bias=False
    out_ref   : VMEM [B*N, O]
    """
    P = pos_n_ref.shape[1]
    I = seq_ref.shape[1]
    O = out_ref.shape[1]

    # Static sublane slices of the weight (starts 0 / P / 2P are 8-aligned).
    w_n = w_ref[pl.ds(0, P), :]          # [P, O]
    w_t = w_ref[pl.ds(P, P), :]          # [P, O]
    w_s = w_ref[pl.ds(2 * P, I), :]      # [I, O]

    # Three small MXU passes; mathematically identical to
    # concat([embed_N, embed_T, seq], -1) @ W^T.
    out_n = jnp.dot(pos_n_ref[...], w_n, preferred_element_type=jnp.float32)  # [N, O]
    out_t = jnp.dot(pos_t_ref[...], w_t, preferred_element_type=jnp.float32)  # [B, O]
    out_s = jnp.dot(seq_ref[...], w_s, preferred_element_type=jnp.float32)    # [B*N, O]

    # out[b*N + n] = out_n[n] + out_t[b] + out_s[b*N + n]   (VPU broadcasts only)
    combined = out_s.reshape(B, N, O) + out_n[None, :, :] + out_t[:, None, :]
    out_ref[...] = combined.reshape(B * N, O)


def timestep_embedding_forward(pos_embedding_N, pos_embedding_T, weight_T,
                               B: int, t, N: int, seq):
    """Pallas implementation of TimestepEmbedding.forward.

    pos_embedding_N : [max_len, P] f32
    pos_embedding_T : [T+5, P]     f32
    weight_T        : [2P + I, O]  f32   (transpose of nn.Linear weight, bias=False)
    t               : [B] int
    seq             : [B, N, I] f32
    returns         : [B, N, O] f32
    """
    P = pos_embedding_N.shape[1]
    I = seq.shape[2]
    O = weight_T.shape[1]

    # Clamp + gather embed_T rows on the XLA side (tiny, overlaps kernel launch).
    t = jnp.clip(t.astype(jnp.int32), 0, pos_embedding_T.shape[0] - 1)
    emb_t = pos_embedding_T[t]                                  # [B, P]

    # The BlockSpec windows the first N rows of the (unsliced) table directly.
    # Only fall back to a wrapper-side slice if N breaks the 8-sublane rule.
    pos_n_in = pos_embedding_N if N % 8 == 0 else pos_embedding_N[:N, :]

    seq_flat = seq.reshape(B * N, I)                            # metadata-only reshape

    kernel = functools.partial(_timestep_embed_kernel, B=B, N=N)

    out_flat = pl.pallas_call(
        kernel,
        out_shape=jax.ShapeDtypeStruct((B * N, O), jnp.float32),
        grid_spec=pltpu.PrefetchScalarGridSpec(
            num_scalar_prefetch=0,
            grid=(1,),                                          # whole problem, one invocation
            in_specs=[
                pl.BlockSpec((N, P), lambda i: (0, 0)),         # embed_N window
                pl.BlockSpec((B, P), lambda i: (0, 0)),         # gathered embed_T rows
                pl.BlockSpec((B * N, I), lambda i: (0, 0)),     # seq slab
                pl.BlockSpec((2 * P + I, O), lambda i: (0, 0)), # weight (transposed)
            ],
            out_specs=pl.BlockSpec((B * N, O), lambda i: (0, 0)),
        ),
        compiler_params=pltpu.CompilerParams(
            dimension_semantics=("arbitrary",)),                # don't split tiny work across TCs
    )(pos_n_in, emb_t, seq_flat, weight_T)

    return out_flat.reshape(B, N, O)


if __name__ == "__main__":
    # Module hyper-parameters (consistent with __init__ defaults).
    max_len = 3000
    T = 1000
    pos_embed_size = 64
    input_size = 20
    output_embed_size = 20

    # Forward-call shapes.
    B = 2
    N = 8

    # Deterministic buffers / parameters.
    pos_embedding_N = jnp.asarray(positional_embedding(max_len, pos_embed_size))
    pos_embedding_T = jnp.asarray(positional_embedding(T + 5, pos_embed_size))

    key = jax.random.PRNGKey(0)
    k_w, k_seq, k_t = jax.random.split(key, 3)
    fan_in = pos_embed_size * 2 + input_size
    bound = 1.0 / np.sqrt(fan_in)
    # nn.Linear weight is [out, in]; store transposed [in, out] for x @ W^T (bias=False).
    weight = jax.random.uniform(k_w, (output_embed_size, fan_in),
                                minval=-bound, maxval=bound, dtype=jnp.float32)
    weight_T = weight.T

    seq = jax.random.normal(k_seq, (B, N, input_size), dtype=jnp.float32)
    t = jax.random.randint(k_t, (B,), 0, T, dtype=jnp.int32)

    out = timestep_embedding_forward(pos_embedding_N, pos_embedding_T, weight_T,
                                     B, t, N, seq)
    out = jax.block_until_ready(out)

    # Pure-JAX reference (concat + linear, bias=False).
    embed_N_ref = jnp.tile(pos_embedding_N[None, :, :], (B, 1, 1))[:, :N, :]
    embed_T_ref = jnp.tile(pos_embedding_T[t][:, None, :], (1, N, 1))
    all_embed = jnp.concatenate([embed_N_ref, embed_T_ref, seq], axis=-1)
    ref = jnp.einsum("bnk,ko->bno", all_embed, weight_T)

    assert out.shape == (B, N, output_embed_size)
    np.testing.assert_allclose(np.asarray(out), np.asarray(ref), rtol=1e-5, atol=1e-5)
    print("KERNEL_OK")
</pallas_src>

<mosaic_0001>
module attributes {stable_mosaic.version = 11 : i64} {
  func.func @_timestep_embed_kernel(%arg0: i32, %arg1: memref<8x64xf32, #tpu.memory_space<vmem>>, %arg2: memref<2x64xf32, #tpu.memory_space<vmem>>, %arg3: memref<16x20xf32, #tpu.memory_space<vmem>>, %arg4: memref<148x20xf32, #tpu.memory_space<vmem>>, %arg5: memref<16x20xf32, #tpu.memory_space<vmem>>) attributes {dimension_semantics = [#tpu.dimension_semantics<arbitrary>], iteration_bounds = array<i64: 1>, scalar_prefetch = 0 : i64, scratch_operands = 0 : i64, tpu.core_type = #tpu.core_type<tc>, window_params = [{transform_indices = @transform_0, window_bounds = array<i64: 8, 64>}, {pipeline_mode = #tpu.pipeline_mode<synchronous>, transform_indices = @transform_1, window_bounds = array<i64: 2, 64>}, {pipeline_mode = #tpu.pipeline_mode<synchronous>, transform_indices = @transform_2, window_bounds = array<i64: 16, 20>}, {pipeline_mode = #tpu.pipeline_mode<synchronous>, transform_indices = @transform_3, window_bounds = array<i64: 148, 20>}, {pipeline_mode = #tpu.pipeline_mode<synchronous>, transform_indices = @transform_4, window_bounds = array<i64: 16, 20>}]} {
    %c0 = arith.constant 0 : index
    %c0_0 = arith.constant 0 : index
    %0 = vector.load %arg4[%c0, %c0_0] : memref<148x20xf32, #tpu.memory_space<vmem>>, vector<64x20xf32>
    %c64 = arith.constant 64 : index
    %c0_1 = arith.constant 0 : index
    %1 = vector.load %arg4[%c64, %c0_1] : memref<148x20xf32, #tpu.memory_space<vmem>>, vector<64x20xf32>
    %c128 = arith.constant 128 : index
    %c0_2 = arith.constant 0 : index
    %2 = vector.load %arg4[%c128, %c0_2] : memref<148x20xf32, #tpu.memory_space<vmem>>, vector<20x20xf32>
    %c0_3 = arith.constant 0 : index
    %c0_4 = arith.constant 0 : index
    %3 = vector.load %arg1[%c0_3, %c0_4] : memref<8x64xf32, #tpu.memory_space<vmem>>, vector<8x64xf32>
    %cst = arith.constant dense<0.000000e+00> : vector<8x20xf32>
    %4 = tpu.matmul %3, %0, %cst {dimension_numbers = #tpu.dot_dimension_numbers<[1], [0], [0], [1], [0, 0, 1, 1], [], []>} : vector<8x64xf32>, vector<64x20xf32>, vector<8x20xf32> -> vector<8x20xf32>
    %c0_5 = arith.constant 0 : index
    %c0_6 = arith.constant 0 : index
    %5 = vector.load %arg2[%c0_5, %c0_6] : memref<2x64xf32, #tpu.memory_space<vmem>>, vector<2x64xf32>
    %cst_7 = arith.constant dense<0.000000e+00> : vector<2x20xf32>
    %6 = tpu.matmul %5, %1, %cst_7 {dimension_numbers = #tpu.dot_dimension_numbers<[1], [0], [0], [1], [0, 0, 1, 1], [], []>} : vector<2x64xf32>, vector<64x20xf32>, vector<2x20xf32> -> vector<2x20xf32>
    %c0_8 = arith.constant 0 : index
    %c0_9 = arith.constant 0 : index
    %7 = vector.load %arg3[%c0_8, %c0_9] : memref<16x20xf32, #tpu.memory_space<vmem>>, vector<16x20xf32>
    %cst_10 = arith.constant dense<0.000000e+00> : vector<16x20xf32>
    %8 = tpu.matmul %7, %2, %cst_10 {dimension_numbers = #tpu.dot_dimension_numbers<[1], [0], [0], [1], [0, 0, 1, 1], [], []>} : vector<16x20xf32>, vector<20x20xf32>, vector<16x20xf32> -> vector<16x20xf32>
    %9 = vector.shape_cast %8 : vector<16x20xf32> to vector<2x8x20xf32>
    %10 = vector.shape_cast %4 : vector<8x20xf32> to vector<1x8x20xf32>
    %11 = vector.broadcast %10 : vector<1x8x20xf32> to vector<2x8x20xf32>
    %12 = arith.addf %9, %11 : vector<2x8x20xf32>
    %13 = vector.shape_cast %6 : vector<2x20xf32> to vector<2x1x20xf32>
    %14 = vector.broadcast %13 : vector<2x1x20xf32> to vector<2x8x20xf32>
    %15 = arith.addf %12, %14 : vector<2x8x20xf32>
    %16 = vector.shape_cast %15 : vector<2x8x20xf32> to vector<16x20xf32>
    %c0_11 = arith.constant 0 : index
    %c0_12 = arith.constant 0 : index
    %17 = vector.load %arg5[%c0_11, %c0_12] : memref<16x20xf32, #tpu.memory_space<vmem>>, vector<16x20xf32>
    tpu.vector_store %arg5[%c0_11, %c0_12], %16 {strides = array<i32>} : memref<16x20xf32, #tpu.memory_space<vmem>>, vector<16x20xf32>,
    return
  }
  func.func @transform_0(%arg0: i32) -> (i32, i32) {
    %c0_i32 = arith.constant 0 : i32
    %c0_i32_0 = arith.constant 0 : i32
    %c0_i32_1 = arith.constant 0 : i32
    return %c0_i32, %c0_i32_0 : i32, i32
  }
  func.func @transform_1(%arg0: i32) -> (i32, i32) {
    %c0_i32 = arith.constant 0 : i32
    %c0_i32_0 = arith.constant 0 : i32
    %c0_i32_1 = arith.constant 0 : i32
    return %c0_i32, %c0_i32_0 : i32, i32
  }
  func.func @transform_2(%arg0: i32) -> (i32, i32) {
    %c0_i32 = arith.constant 0 : i32
    %c0_i32_0 = arith.constant 0 : i32
    %c0_i32_1 = arith.constant 0 : i32
    return %c0_i32, %c0_i32_0 : i32, i32
  }
  func.func @transform_3(%arg0: i32) -> (i32, i32) {
    %c0_i32 = arith.constant 0 : i32
    %c0_i32_0 = arith.constant 0 : i32
    %c0_i32_1 = arith.constant 0 : i32
    return %c0_i32, %c0_i32_0 : i32, i32
  }
  func.func @transform_4(%arg0: i32) -> (i32, i32) {
    %c0_i32 = arith.constant 0 : i32
    %c0_i32_0 = arith.constant 0 : i32
    %c0_i32_1 = arith.constant 0 : i32
    return %c0_i32, %c0_i32_0 : i32, i32
  }
}

</mosaic_0001>

<llo_original>
// kernel: tpu_custom_call.1
$region0: #{tpu_custom_call.1}
  #allocation0 [shape = 'u32[]', space=smem, size = 0x4, offset = 0x4, fixed_abs, tag = 'smem constant byte address 0x4 - core index']
  #allocation1 [shape = 'u32[144,128]{1,0:T(1,128)}', space=vmem, size = 0x12000, scoped, tag = 'internal scratch']
  %s0 = inlined_call_operand.vmem [shape: f32[3000,64], index: 0, kind: input, shape index: {}]
  %s1 = inlined_call_operand.vmem [shape: f32[2,64], index: 1, kind: input, shape index: {}]
  %s2 = inlined_call_operand.vmem [shape: f32[16,20], index: 2, kind: input, shape index: {}]
  %s3 = inlined_call_operand.vmem [shape: f32[148,20], index: 3, kind: input, shape index: {}]
  %s4 = inlined_call_operand.hbm [shape: f32[16,20], index: 4, kind: output, shape index: {}]
  %s5 = sld [smem:[#allocation0]]
  $region26: #{tpu_custom_call.1} parent=0
    _
  %s7 = ssub.s32 1, %s5
  %s8 = scalar_select 0, %s7, %s5
  $region1: #{tpu_custom_call.1} parent=0
    #allocation2 [shape = 'u8[8192]{0}', space=vmem, size = 0x2000, scoped, tag = 'output window, operand 0, single buffered']
    #allocation3 [shape = 's32[1]{0}', space=sflag, size = 0x4, scoped, tag = 'scoped memory for tpu_custom_call.1']
    %9 = vsyncpa [#allocation3], 0
    // Predicated region
    $region2: #{tpu_custom_call.1} parent=1 // pred_check
      _
    $region3: #{tpu_custom_call.1} parent=1 // pred_check_branch
      %11 = sbr.rel (0) target = $region5
    $region4: #{tpu_custom_call.1} parent=1 // pred_region
      _
    $region5: #{tpu_custom_call.1} parent=1 // pred_fallthru
      _
    // Predicated region
    $region6: #{tpu_custom_call.1} parent=1 // pred_check
      _
    $region7: #{tpu_custom_call.1} parent=1 // pred_check_branch
      %13 = sbr.rel (0) target = $region9
    $region8: #{tpu_custom_call.1} parent=1 // pred_region
      _
    $region9: #{tpu_custom_call.1} parent=1 // pred_fallthru
      _
    // Predicated region
    $region10: #{tpu_custom_call.1} parent=1 // pred_check
      _
    $region11: #{tpu_custom_call.1} parent=1 // pred_check_branch
      %15 = sbr.rel (0) target = $region13
    $region12: #{tpu_custom_call.1} parent=1 // pred_region
      _
    $region13: #{tpu_custom_call.1} parent=1 // pred_fallthru
      _
    // Predicated region
    $region14: #{tpu_custom_call.1} parent=1 // pred_check
      _
    $region15: #{tpu_custom_call.1} parent=1 // pred_check_branch
      %17 = sbr.rel (0) target = $region17
    $region16: #{tpu_custom_call.1} parent=1 // pred_region
      _
    $region17: #{tpu_custom_call.1} parent=1 // pred_fallthru
      _
    %v18 = vld [vmem:[%s3] sm:$0xff]
    %v19 = vld [vmem:[%s3 + $0x8] sm:$0xff]
    %v20 = vld [vmem:[%s3 + $0x10] sm:$0xff]
    %v21 = vld [vmem:[%s3 + $0x18] sm:$0xff]
    %v22 = vld [vmem:[%s3 + $0x20] sm:$0xff]
    %v23 = vld [vmem:[%s3 + $0x28] sm:$0xff]
    %v24 = vld [vmem:[%s3 + $0x30] sm:$0xff]
    %v25 = vld [vmem:[%s3 + $0x38] sm:$0xff]
    %v26 = vld [vmem:[%s3 + $0x40] sm:$0xff]
    %v27 = vld [vmem:[%s3 + $0x48] sm:$0xff]
    %v28 = vld [vmem:[%s3 + $0x50] sm:$0xff]
    %v29 = vld [vmem:[%s3 + $0x58] sm:$0xff]
    %v30 = vld [vmem:[%s3 + $0x60] sm:$0xff]
    %v31 = vld [vmem:[%s3 + $0x68] sm:$0xff]
    %v32 = vld [vmem:[%s3 + $0x70] sm:$0xff]
    %v33 = vld [vmem:[%s3 + $0x78] sm:$0xff]
    %v34 = vld [vmem:[%s3 + $0x80] sm:$0xff]
    %v35 = vld [vmem:[%s3 + $0x88] sm:$0xff]
    %v36 = vld [vmem:[%s3 + $0x90] sm:$0xf]
    %v37 = vld [vmem:[%s0] sm:$0xff]
    %vm38 = vcmask 523264
    %v40 = vsel %vm38, %v37, 0
    %42 = vmatprep.subr.mxu0 0.0
    %43 = vmatpush1.msra.mxu0 %v18
    %44 = vmatprep.subr.mxu0 0.0
    %45 = vmatpush1.msra.mxu0 %v19
    %46 = vmatprep.subr.mxu0 0.0
    %47 = vmatpush1.msra.mxu0 %v20
    %48 = vmatprep.subr.mxu0 0.0
    %49 = vmatpush1.msra.mxu0 %v21
    %50 = vmatprep.subr.mxu0 0.0
    %51 = vmatpush1.msra.mxu0 %v22
    %52 = vmatprep.subr.mxu0 0.0
    %53 = vmatpush1.msra.mxu0 %v23
    %54 = vmatprep.subr.mxu0 0.0
    %55 = vmatpush1.msra.mxu0 %v24
    %56 = vmatprep.subr.mxu0 0.0
    %57 = vmatpush1.msra.mxu0 %v25
    %58 = vmatprep.subr.mxu0 0.0
    %59 = vmatpush1.msra.mxu0 0.0
    %60 = vmatprep.subr.mxu0 0.0
    %61 = vmatpush1.msra.mxu0 0.0
    %62 = vmatprep.subr.mxu0 0.0
    %63 = vmatpush1.msra.mxu0 0.0
    %64 = vmatprep.subr.mxu0 0.0
    %65 = vmatpush1.msra.mxu0 0.0
    %66 = vmatprep.subr.mxu0 0.0
    %67 = vmatpush1.msra.mxu0 0.0
    %68 = vmatprep.subr.mxu0 0.0
    %69 = vmatpush1.msra.mxu0 0.0
    %70 = vmatprep.subr.mxu0 0.0
    %71 = vmatpush1.msra.mxu0 0.0
    %72 = vmatprep.subr.mxu0 0.0
    %73 = vmatpush1.msra.mxu0 0.0
    %74 = vmatprep.subr.mxu0 0.0
    %75 = vmatpush1.msra.mxu0 0.0
    %76 = vmatprep.subr.mxu0 0.0
    %77 = vmatpush1.msra.mxu0 0.0
    %78 = vmatprep.subr.mxu0 0.0
    %79 = vmatpush1.msra.mxu0 0.0
    %80 = vmatprep.subr.mxu0 0.0
    %81 = vmatpush1.msra.mxu0 0.0
    %82 = vmatprep.subr.mxu0 0.0
    %83 = vmatpush1.msra.mxu0 0.0
    %84 = vmatprep.subr.mxu0 0.0
    %85 = vmatpush1.msra.mxu0 0.0
    %86 = vmatprep.subr.mxu0 0.0
    %87 = vmatpush1.msra.mxu0 0.0
    %88 = vmatprep.subr.mxu0 0.0
    %89 = vmatpush1.msra.mxu0 0.0
    %90 = vmatprep.subr.mxu0 0.0
    %91 = vmatpush1.msra.mxu0 0.0
    %92 = vmatprep.subr.mxu0 0.0
    %93 = vmatpush1.msra.mxu0 0.0
    %94 = vmatprep.subr.mxu0 0.0
    %95 = vmatpush1.msra.mxu0 0.0
    %96 = vmatprep.subr.mxu0 0.0
    %97 = vmatpush1.msra.mxu0 0.0
    %98 = vmatprep.subr.mxu0 0.0
    %99 = vmatpush1.msra.mxu0 0.0
    %100 = vmatprep.subr.mxu0 0.0
    %101 = vmatpush1.msra.mxu0 0.0
    %102 = vmatprep.subr.mxu0 0.0
    %103 = vmatpush1.msra.mxu0 0.0
    %104 = vmatprep.subr.mxu0 0.0
    %105 = vmatpush1.msra.mxu0 0.0
    %106 = vmatprep.mubr.f32.mxu0 0.0
    %107 = vmatmul.mubr.f32.gmra.mrb[0].mxu0 %v40
    %v108 = vpop.f32.mrb[0].mxu0
    %v109 = vadd.f32 0.0, %v108
    %v110 = vpop.f32.mrb[0].mxu0
    %111 = vdwg.mxu0
    %v112 = vld [vmem:[%s1] sm:$0x3]
    %v114 = vsel %vm38, %v112, 0
    %116 = vmatprep.subr.mxu0 0.0
    %117 = vmatpush1.msra.mxu0 %v26
    %118 = vmatprep.subr.mxu0 0.0
    %119 = vmatpush1.msra.mxu0 %v27
    %120 = vmatprep.subr.mxu0 0.0
    %121 = vmatpush1.msra.mxu0 %v28
    %122 = vmatprep.subr.mxu0 0.0
    %123 = vmatpush1.msra.mxu0 %v29
    %124 = vmatprep.subr.mxu0 0.0
    %125 = vmatpush1.msra.mxu0 %v30
    %126 = vmatprep.subr.mxu0 0.0
    %127 = vmatpush1.msra.mxu0 %v31
    %128 = vmatprep.subr.mxu0 0.0
    %129 = vmatpush1.msra.mxu0 %v32
    %130 = vmatprep.subr.mxu0 0.0
    %131 = vmatpush1.msra.mxu0 %v33
    %132 = vmatprep.subr.mxu0 0.0
    %133 = vmatpush1.msra.mxu0 0.0
    %134 = vmatprep.subr.mxu0 0.0
    %135 = vmatpush1.msra.mxu0 0.0
    %136 = vmatprep.subr.mxu0 0.0
    %137 = vmatpush1.msra.mxu0 0.0
    %138 = vmatprep.subr.mxu0 0.0
    %139 = vmatpush1.msra.mxu0 0.0
    %140 = vmatprep.subr.mxu0 0.0
    %141 = vmatpush1.msra.mxu0 0.0
    %142 = vmatprep.subr.mxu0 0.0
    %143 = vmatpush1.msra.mxu0 0.0
    %144 = vmatprep.subr.mxu0 0.0
    %145 = vmatpush1.msra.mxu0 0.0
    %146 = vmatprep.subr.mxu0 0.0
    %147 = vmatpush1.msra.mxu0 0.0
    %148 = vmatprep.subr.mxu0 0.0
    %149 = vmatpush1.msra.mxu0 0.0
    %150 = vmatprep.subr.mxu0 0.0
    %151 = vmatpush1.msra.mxu0 0.0
    %152 = vmatprep.subr.mxu0 0.0
    %153 = vmatpush1.msra.mxu0 0.0
    %154 = vmatprep.subr.mxu0 0.0
    %155 = vmatpush1.msra.mxu0 0.0
    %156 = vmatprep.subr.mxu0 0.0
    %157 = vmatpush1.msra.mxu0 0.0
    %158 = vmatprep.subr.mxu0 0.0
    %159 = vmatpush1.msra.mxu0 0.0
    %160 = vmatprep.subr.mxu0 0.0
    %161 = vmatpush1.msra.mxu0 0.0
    %162 = vmatprep.subr.mxu0 0.0
    %163 = vmatpush1.msra.mxu0 0.0
    %164 = vmatprep.subr.mxu0 0.0
    %165 = vmatpush1.msra.mxu0 0.0
    %166 = vmatprep.subr.mxu0 0.0
    %167 = vmatpush1.msra.mxu0 0.0
    %168 = vmatprep.subr.mxu0 0.0
    %169 = vmatpush1.msra.mxu0 0.0
    %170 = vmatprep.subr.mxu0 0.0
    %171 = vmatpush1.msra.mxu0 0.0
    %172 = vmatprep.subr.mxu0 0.0
    %173 = vmatpush1.msra.mxu0 0.0
    %174 = vmatprep.subr.mxu0 0.0
    %175 = vmatpush1.msra.mxu0 0.0
    %176 = vmatprep.subr.mxu0 0.0
    %177 = vmatpush1.msra.mxu0 0.0
    %178 = vmatprep.subr.mxu0 0.0
    %179 = vmatpush1.msra.mxu0 0.0
    %180 = vmatprep.mubr.f32.mxu0 0.0
    %181 = vmatmul.mubr.f32.gmra.mrb[0].mxu0 %v114
    %v182 = vpop.f32.mrb[0].mxu0
    %v183 = vadd.f32 0.0, %v182
    %v184 = vpop.f32.mrb[0].mxu0
    %185 = vdwg.mxu0
    %v186 = vld [vmem:[%s2] sm:$0xff]
    %v187 = vld [vmem:[%s2 + $0x8] sm:$0xff]
    %vm188 = vcmask 162816
    %v190 = vsel %vm188, %v186, 0
    %v193 = vsel %vm188, %v187, 0
    %vm195 = vcmask 1043456
    %v197 = vsel %vm195, %v36, 0
    %199 = vmatprep.subr.mxu0 0.0
    %200 = vmatpush1.msra.mxu0 %v34
    %201 = vmatprep.subr.mxu0 0.0
    %202 = vmatpush1.msra.mxu0 %v35
    %203 = vmatprep.subr.mxu0 0.0
    %204 = vmatpush1.msra.mxu0 %v197
    %205 = vmatprep.subr.mxu0 0.0
    %206 = vmatpush1.msra.mxu0 0.0
    %207 = vmatprep.subr.mxu0 0.0
    %208 = vmatpush1.msra.mxu0 0.0
    %209 = vmatprep.subr.mxu0 0.0
    %210 = vmatpush1.msra.mxu0 0.0
    %211 = vmatprep.subr.mxu0 0.0
    %212 = vmatpush1.msra.mxu0 0.0
    %213 = vmatprep.subr.mxu0 0.0
    %214 = vmatpush1.msra.mxu0 0.0
    %215 = vmatprep.subr.mxu0 0.0
    %216 = vmatpush1.msra.mxu0 0.0
    %217 = vmatprep.subr.mxu0 0.0
    %218 = vmatpush1.msra.mxu0 0.0
    %219 = vmatprep.subr.mxu0 0.0
    %220 = vmatpush1.msra.mxu0 0.0
    %221 = vmatprep.subr.mxu0 0.0
    %222 = vmatpush1.msra.mxu0 0.0
    %223 = vmatprep.subr.mxu0 0.0
    %224 = vmatpush1.msra.mxu0 0.0
    %225 = vmatprep.subr.mxu0 0.0
    %226 = vmatpush1.msra.mxu0 0.0
    %227 = vmatprep.subr.mxu0 0.0
    %228 = vmatpush1.msra.mxu0 0.0
    %229 = vmatprep.subr.mxu0 0.0
    %230 = vmatpush1.msra.mxu0 0.0
    %231 = vmatprep.subr.mxu0 0.0
    %232 = vmatpush1.msra.mxu0 0.0
    %233 = vmatprep.subr.mxu0 0.0
    %234 = vmatpush1.msra.mxu0 0.0
    %235 = vmatprep.subr.mxu0 0.0
    %236 = vmatpush1.msra.mxu0 0.0
    %237 = vmatprep.subr.mxu0 0.0
    %238 = vmatpush1.msra.mxu0 0.0
    %239 = vmatprep.subr.mxu0 0.0
    %240 = vmatpush1.msra.mxu0 0.0
    %241 = vmatprep.subr.mxu0 0.0
    %242 = vmatpush1.msra.mxu0 0.0
    %243 = vmatprep.subr.mxu0 0.0
    %244 = vmatpush1.msra.mxu0 0.0
    %245 = vmatprep.subr.mxu0 0.0
    %246 = vmatpush1.msra.mxu0 0.0
    %247 = vmatprep.subr.mxu0 0.0
    %248 = vmatpush1.msra.mxu0 0.0
    %249 = vmatprep.subr.mxu0 0.0
    %250 = vmatpush1.msra.mxu0 0.0
    %251 = vmatprep.subr.mxu0 0.0
    %252 = vmatpush1.msra.mxu0 0.0
    %253 = vmatprep.subr.mxu0 0.0
    %254 = vmatpush1.msra.mxu0 0.0
    %255 = vmatprep.subr.mxu0 0.0
    %256 = vmatpush1.msra.mxu0 0.0
    %257 = vmatprep.subr.mxu0 0.0
    %258 = vmatpush1.msra.mxu0 0.0
    %259 = vmatprep.subr.mxu0 0.0
    %260 = vmatpush1.msra.mxu0 0.0
    %261 = vmatprep.subr.mxu0 0.0
    %262 = vmatpush1.msra.mxu0 0.0
    %263 = vmatprep.mubr.f32.mxu0 0.0
    %264 = vmatmul.mubr.f32.gmra.mrb[0].mxu0 %v190
    %v265 = vpop.f32.mrb[0].mxu0
    %v266 = vadd.f32 0.0, %v265
    %v267 = vpop.f32.mrb[0].mxu0
    %268 = vmatprep.mubr.f32.mxu0 0.0
    %269 = vmatmul.mubr.f32.gmra.mrb[0].mxu0 %v193
    %v270 = vpop.f32.mrb[0].mxu0
    %v271 = vadd.f32 0.0, %v270
    %v272 = vpop.f32.mrb[0].mxu0
    %273 = vdwg.mxu0
    %v274 = vadd.f32 %v266, %v109
    %v275 = vadd.f32 %v271, %v109
    %v278 = vunpack.c.l.s4 1966171168
    %v279 = vunpack.c.0.s8 %v278
    %v280 = vlaneseq
    %v281 = vshrl.u32 %v280, 7
    %v282 = vsub.s32 %v279, %v281
    %v283 = vrot.slane %v183, %v282
    %v284 = vcombine.high %v283, %v283
    %v286 = vunpack.c.l.s4 1966171168
    %v287 = vunpack.c.0.s8 %v286
    %v288 = vlaneseq
    %v289 = vshrl.u32 %v288, 7
    %v290 = vsub.s32 %v287, %v289
    %v291 = vrot.slane %v283, %v290
    %v293 = vunpack.c.l.s4 1966171168
    %v294 = vunpack.c.0.s8 %v293
    %v295 = vlaneseq
    %v296 = vshrl.u32 %v295, 7
    %v297 = vsub.s32 %v294, %v296
    %v298 = vrot.slane %v284, %v297
    %v299 = vlaneseq
    %v300 = vshrl.u32 %v299, 7
    %v301 = vsub.s32 0, %v300
    %v302 = vrot.slane %v291, %v301
    %v303 = vlaneseq
    %v304 = vshrl.u32 %v303, 7
    %v305 = vsub.s32 0, %v304
    %v306 = vrot.slane %v298, %v305
    %v309 = vadd.f32 %v274, %v302
    %v310 = vadd.f32 %v275, %v306
    %311 = vst.msk [vmem:[#allocation2] sm:$0xff] %vm188, %v309
    %312 = vst.msk [vmem:[#allocation2 + $0x8] sm:$0xff] %vm188, %v310
    // Predicated region
    $region18: #{tpu_custom_call.1} parent=1 // pred_check
      _
    $region19: #{tpu_custom_call.1} parent=1 // pred_check_branch
      %314 = sbr.rel (0) target = $region21
    $region20: #{tpu_custom_call.1} parent=1 // pred_region
      %s316 = ssub.s32 256, 256
      %317 = vsyncadd [#allocation3], %s316
      %s318 = sshll.u32 [#allocation2], 4
      %s319 = int_to_ptr.vmem [resolvable:$true] %s318
      %324 = dma.vmem_to_hbm [thread:$0]  %s319, 256, %s4, [#allocation3], 128, 128, 8
    $region21: #{tpu_custom_call.1} parent=1 // pred_fallthru
      _
    // Predicated region
    $region22: #{tpu_custom_call.1} parent=1 // pred_check
      _
    $region23: #{tpu_custom_call.1} parent=1 // pred_check_branch
      %326 = sbr.rel (0) target = $region25
    $region24: #{tpu_custom_call.1} parent=1 // pred_region
      %327 = dma.done [#allocation3], 256
    $region25: #{tpu_custom_call.1} parent=1 // pred_fallthru
      _
    %328 = vsyncpa [#allocation3], 1

</llo_original>
